<compile_context>
chip_gen: v6e
topology: v6e:2x2x1
jax: 0.10.0
libtpu: 0.0.40
codegen_flags: <defaults>
</compile_context>

<pallas_src>
import functools

import jax
import jax.numpy as jnp
from jax.experimental import pallas as pl
from jax.experimental.pallas import tpu as pltpu

LANE = 128      # TPU lane width (last-dim vreg extent)
SUBLANE = 8     # f32 sublane extent


def _round_up(n, m):
    return ((n + m - 1) // m) * m


def _lrelu(v, slope=0.02):
    return jnp.where(v >= 0, v, slope * v)


def discriminator_kernel(x_ref,
                         w1_ref, b1_ref,
                         w2_ref, b2_ref,
                         w3_ref, b3_ref,
                         w4_ref, b4_ref,
                         o_ref):
    # All four Linear layers + activations fused; everything is VMEM-resident.
    x = x_ref[...]
    h = _lrelu(jnp.dot(x, w1_ref[...], preferred_element_type=jnp.float32)
               + b1_ref[...])
    h = _lrelu(jnp.dot(h, w2_ref[...], preferred_element_type=jnp.float32)
               + b2_ref[...])
    h = _lrelu(jnp.dot(h, w3_ref[...], preferred_element_type=jnp.float32)
               + b3_ref[...])
    z = (jnp.dot(h, w4_ref[...], preferred_element_type=jnp.float32)
         + b4_ref[...])
    # Sigmoid: exp + approx reciprocal both issue on the EUP slot.
    o_ref[...] = pl.reciprocal(1.0 + jnp.exp(-z), approx=True).astype(o_ref.dtype)


@functools.partial(jax.jit, static_argnames=("batch_tile",))
def discriminator_forward(x, params, batch_tile=512):
    """x: [B, input_size] float32; params: dict of PyTorch-shaped weights."""
    B, in_dim = x.shape
    hid = params["w1"].shape[0]
    out_dim = params["w4"].shape[0]

    # --- Pad feature dims to the 128-lane width (done once, outside the grid).
    in_p = _round_up(in_dim, LANE)
    hid_p = _round_up(hid, LANE)
    out_p = _round_up(out_dim, LANE)

    def pad_w(w, rows, cols):
        # PyTorch nn.Linear weight is [out, in]; transpose to [in, out], zero-pad.
        wt = w.T
        return jnp.pad(wt, ((0, rows - wt.shape[0]), (0, cols - wt.shape[1])))

    def pad_b(b, cols):
        return jnp.pad(b.reshape(1, -1), ((0, 0), (0, cols - b.shape[0])))

    w1 = pad_w(params["w1"], in_p, hid_p);  b1 = pad_b(params["b1"], hid_p)
    w2 = pad_w(params["w2"], hid_p, hid_p); b2 = pad_b(params["b2"], hid_p)
    w3 = pad_w(params["w3"], hid_p, hid_p); b3 = pad_b(params["b3"], hid_p)
    w4 = pad_w(params["w4"], hid_p, out_p); b4 = pad_b(params["b4"], out_p)

    # --- Batch tiling: big tiles to amortize per-grid-step overhead, but never
    #     bigger than the (sublane-rounded) batch; pad rows so tiles are full.
    bt = min(batch_tile, _round_up(B, SUBLANE))
    bt = _round_up(bt, SUBLANE)
    b_pad = _round_up(B, bt)
    x_p = jnp.pad(x, ((0, b_pad - B), (0, in_p - in_dim)))

    grid = (b_pad // bt,)
    weight_spec = lambda shape: pl.BlockSpec(shape, lambda i: (0, 0))

    out_padded = pl.pallas_call(
        discriminator_kernel,
        out_shape=jax.ShapeDtypeStruct((b_pad, out_p), x.dtype),
        grid_spec=pltpu.PrefetchScalarGridSpec(
            num_scalar_prefetch=0,
            grid=grid,
            in_specs=[
                pl.BlockSpec((bt, in_p), lambda i: (i, 0)),               # x tile
                weight_spec((in_p, hid_p)),  weight_spec((1, hid_p)),     # map1
                weight_spec((hid_p, hid_p)), weight_spec((1, hid_p)),     # map2
                weight_spec((hid_p, hid_p)), weight_spec((1, hid_p)),     # map3
                weight_spec((hid_p, out_p)), weight_spec((1, out_p)),     # map4
            ],
            out_specs=pl.BlockSpec((bt, out_p), lambda i: (i, 0)),
        ),
        compiler_params=pltpu.CompilerParams(
            dimension_semantics=("parallel",)),
    )(x_p, w1, b1, w2, b2, w3, b3, w4, b4)

    # Strip batch-row and output-lane padding.
    return out_padded[:B, :out_dim]


def init_params(key, input_size, hidden_size, output_size):
    """Deterministic synthetic parameters with PyTorch nn.Linear shapes."""
    ks = jax.random.split(key, 8)
    scale = 0.1
    return {
        "w1": scale * jax.random.normal(ks[0], (hidden_size, input_size), jnp.float32),
        "b1": scale * jax.random.normal(ks[1], (hidden_size,), jnp.float32),
        "w2": scale * jax.random.normal(ks[2], (hidden_size, hidden_size), jnp.float32),
        "b2": scale * jax.random.normal(ks[3], (hidden_size,), jnp.float32),
        "w3": scale * jax.random.normal(ks[4], (hidden_size, hidden_size), jnp.float32),
        "b3": scale * jax.random.normal(ks[5], (hidden_size,), jnp.float32),
        "w4": scale * jax.random.normal(ks[6], (output_size, hidden_size), jnp.float32),
        "b4": scale * jax.random.normal(ks[7], (output_size,), jnp.float32),
    }


def reference_forward(x, p):
    """Pure-JAX reference mirroring the PyTorch module exactly."""
    def lrelu(v):
        return jnp.where(v >= 0, v, 0.02 * v)
    h = lrelu(x @ p["w1"].T + p["b1"])
    h = lrelu(h @ p["w2"].T + p["b2"])
    h = lrelu(h @ p["w3"].T + p["b3"])
    return jax.nn.sigmoid(h @ p["w4"].T + p["b4"])


if __name__ == "__main__":
    key = jax.random.PRNGKey(0)
    k_x, k_x2, k_p = jax.random.split(key, 3)

    batch, input_size, hidden_size, output_size = 8, 16, 32, 1
    params = init_params(k_p, input_size, hidden_size, output_size)

    # Small-batch check (single grid step, auto-shrunk tile).
    x = jax.random.normal(k_x, (batch, input_size), jnp.float32)
    out = jax.block_until_ready(discriminator_forward(x, params))
    ref = reference_forward(x, params)
    assert out.shape == (batch, output_size)
    assert jnp.allclose(out, ref, atol=2e-3, rtol=2e-3), "mismatch vs reference (small)"

    # Larger, non-multiple batch: multiple grid steps + row-padding path.
    big_batch = 200
    x2 = jax.random.normal(k_x2, (big_batch, input_size), jnp.float32)
    out2 = jax.block_until_ready(discriminator_forward(x2, params, batch_tile=64))
    ref2 = reference_forward(x2, params)
    assert out2.shape == (big_batch, output_size)
    assert jnp.allclose(out2, ref2, atol=2e-3, rtol=2e-3), "mismatch vs reference (tiled)"

    print("KERNEL_OK")
</pallas_src>

<mosaic_0001>
module attributes {stable_mosaic.version = 11 : i64} {
  func.func @discriminator_kernel(%arg0: i32, %arg1: memref<8x128xf32, #tpu.memory_space<vmem>>, %arg2: memref<128x128xf32, #tpu.memory_space<vmem>>, %arg3: memref<1x128xf32, #tpu.memory_space<vmem>>, %arg4: memref<128x128xf32, #tpu.memory_space<vmem>>, %arg5: memref<1x128xf32, #tpu.memory_space<vmem>>, %arg6: memref<128x128xf32, #tpu.memory_space<vmem>>, %arg7: memref<1x128xf32, #tpu.memory_space<vmem>>, %arg8: memref<128x128xf32, #tpu.memory_space<vmem>>, %arg9: memref<1x128xf32, #tpu.memory_space<vmem>>, %arg10: memref<8x128xf32, #tpu.memory_space<vmem>>) attributes {dimension_semantics = [#tpu.dimension_semantics<parallel>], iteration_bounds = array<i64: 1>, scalar_prefetch = 0 : i64, scratch_operands = 0 : i64, tpu.core_type = #tpu.core_type<tc>, window_params = [{transform_indices = @transform_0, window_bounds = array<i64: 8, 128>}, {pipeline_mode = #tpu.pipeline_mode<synchronous>, transform_indices = @transform_1, window_bounds = array<i64: 128, 128>}, {pipeline_mode = #tpu.pipeline_mode<synchronous>, transform_indices = @transform_2, window_bounds = array<i64: 1, 128>}, {pipeline_mode = #tpu.pipeline_mode<synchronous>, transform_indices = @transform_3, window_bounds = array<i64: 128, 128>}, {pipeline_mode = #tpu.pipeline_mode<synchronous>, transform_indices = @transform_4, window_bounds = array<i64: 1, 128>}, {pipeline_mode = #tpu.pipeline_mode<synchronous>, transform_indices = @transform_5, window_bounds = array<i64: 128, 128>}, {pipeline_mode = #tpu.pipeline_mode<synchronous>, transform_indices = @transform_6, window_bounds = array<i64: 1, 128>}, {pipeline_mode = #tpu.pipeline_mode<synchronous>, transform_indices = @transform_7, window_bounds = array<i64: 128, 128>}, {pipeline_mode = #tpu.pipeline_mode<synchronous>, transform_indices = @transform_8, window_bounds = array<i64: 1, 128>}, {transform_indices = @transform_9, window_bounds = array<i64: 8, 128>}]} {
    %c0 = arith.constant 0 : index
    %c0_0 = arith.constant 0 : index
    %0 = vector.load %arg1[%c0, %c0_0] : memref<8x128xf32, #tpu.memory_space<vmem>>, vector<8x128xf32>
    %c0_1 = arith.constant 0 : index
    %c0_2 = arith.constant 0 : index
    %1 = vector.load %arg2[%c0_1, %c0_2] : memref<128x128xf32, #tpu.memory_space<vmem>>, vector<128x128xf32>
    %cst = arith.constant dense<0.000000e+00> : vector<8x128xf32>
    %2 = tpu.matmul %0, %1, %cst {dimension_numbers = #tpu.dot_dimension_numbers<[1], [0], [0], [1], [0, 0, 1, 1], [], []>} : vector<8x128xf32>, vector<128x128xf32>, vector<8x128xf32> -> vector<8x128xf32>
    %c0_3 = arith.constant 0 : index
    %c0_4 = arith.constant 0 : index
    %3 = vector.load %arg3[%c0_3, %c0_4] : memref<1x128xf32, #tpu.memory_space<vmem>>, vector<1x128xf32>
    %4 = vector.broadcast %3 : vector<1x128xf32> to vector<8x128xf32>
    %5 = arith.addf %2, %4 : vector<8x128xf32>
    %cst_5 = arith.constant 0.000000e+00 : f32
    %6 = vector.broadcast %cst_5 : f32 to vector<8x128xf32>
    %7 = arith.cmpf oge, %5, %6 : vector<8x128xf32>
    %cst_6 = arith.constant 2.000000e-02 : f32
    %8 = vector.broadcast %cst_6 : f32 to vector<8x128xf32>
    %9 = arith.mulf %8, %5 : vector<8x128xf32>
    %10 = arith.select %7, %5, %9 : vector<8x128xi1>, vector<8x128xf32>
    %c0_7 = arith.constant 0 : index
    %c0_8 = arith.constant 0 : index
    %11 = vector.load %arg4[%c0_7, %c0_8] : memref<128x128xf32, #tpu.memory_space<vmem>>, vector<128x128xf32>
    %cst_9 = arith.constant dense<0.000000e+00> : vector<8x128xf32>
    %12 = tpu.matmul %10, %11, %cst_9 {dimension_numbers = #tpu.dot_dimension_numbers<[1], [0], [0], [1], [0, 0, 1, 1], [], []>} : vector<8x128xf32>, vector<128x128xf32>, vector<8x128xf32> -> vector<8x128xf32>
    %c0_10 = arith.constant 0 : index
    %c0_11 = arith.constant 0 : index
    %13 = vector.load %arg5[%c0_10, %c0_11] : memref<1x128xf32, #tpu.memory_space<vmem>>, vector<1x128xf32>
    %14 = vector.broadcast %13 : vector<1x128xf32> to vector<8x128xf32>
    %15 = arith.addf %12, %14 : vector<8x128xf32>
    %cst_12 = arith.constant 0.000000e+00 : f32
    %16 = vector.broadcast %cst_12 : f32 to vector<8x128xf32>
    %17 = arith.cmpf oge, %15, %16 : vector<8x128xf32>
    %cst_13 = arith.constant 2.000000e-02 : f32
    %18 = vector.broadcast %cst_13 : f32 to vector<8x128xf32>
    %19 = arith.mulf %18, %15 : vector<8x128xf32>
    %20 = arith.select %17, %15, %19 : vector<8x128xi1>, vector<8x128xf32>
    %c0_14 = arith.constant 0 : index
    %c0_15 = arith.constant 0 : index
    %21 = vector.load %arg6[%c0_14, %c0_15] : memref<128x128xf32, #tpu.memory_space<vmem>>, vector<128x128xf32>
    %cst_16 = arith.constant dense<0.000000e+00> : vector<8x128xf32>
    %22 = tpu.matmul %20, %21, %cst_16 {dimension_numbers = #tpu.dot_dimension_numbers<[1], [0], [0], [1], [0, 0, 1, 1], [], []>} : vector<8x128xf32>, vector<128x128xf32>, vector<8x128xf32> -> vector<8x128xf32>
    %c0_17 = arith.constant 0 : index
    %c0_18 = arith.constant 0 : index
    %23 = vector.load %arg7[%c0_17, %c0_18] : memref<1x128xf32, #tpu.memory_space<vmem>>, vector<1x128xf32>
    %24 = vector.broadcast %23 : vector<1x128xf32> to vector<8x128xf32>
    %25 = arith.addf %22, %24 : vector<8x128xf32>
    %cst_19 = arith.constant 0.000000e+00 : f32
    %26 = vector.broadcast %cst_19 : f32 to vector<8x128xf32>
    %27 = arith.cmpf oge, %25, %26 : vector<8x128xf32>
    %cst_20 = arith.constant 2.000000e-02 : f32
    %28 = vector.broadcast %cst_20 : f32 to vector<8x128xf32>
    %29 = arith.mulf %28, %25 : vector<8x128xf32>
    %30 = arith.select %27, %25, %29 : vector<8x128xi1>, vector<8x128xf32>
    %c0_21 = arith.constant 0 : index
    %c0_22 = arith.constant 0 : index
    %31 = vector.load %arg8[%c0_21, %c0_22] : memref<128x128xf32, #tpu.memory_space<vmem>>, vector<128x128xf32>
    %cst_23 = arith.constant dense<0.000000e+00> : vector<8x128xf32>
    %32 = tpu.matmul %30, %31, %cst_23 {dimension_numbers = #tpu.dot_dimension_numbers<[1], [0], [0], [1], [0, 0, 1, 1], [], []>} : vector<8x128xf32>, vector<128x128xf32>, vector<8x128xf32> -> vector<8x128xf32>
    %c0_24 = arith.constant 0 : index
    %c0_25 = arith.constant 0 : index
    %33 = vector.load %arg9[%c0_24, %c0_25] : memref<1x128xf32, #tpu.memory_space<vmem>>, vector<1x128xf32>
    %34 = vector.broadcast %33 : vector<1x128xf32> to vector<8x128xf32>
    %35 = arith.addf %32, %34 : vector<8x128xf32>
    %cst_26 = arith.constant 0.000000e+00 : f32
    %36 = vector.broadcast %cst_26 : f32 to vector<8x128xf32>
    %37 = arith.subf %36, %35 : vector<8x128xf32>
    %38 = math.exp %37 : vector<8x128xf32>
    %cst_27 = arith.constant 1.000000e+00 : f32
    %39 = vector.broadcast %cst_27 : f32 to vector<8x128xf32>
    %40 = arith.addf %39, %38 : vector<8x128xf32>
    %41 = tpu.reciprocal %40 {approx = true} : vector<8x128xf32> -> vector<8x128xf32>
    %c0_28 = arith.constant 0 : index
    %c0_29 = arith.constant 0 : index
    %42 = vector.load %arg10[%c0_28, %c0_29] : memref<8x128xf32, #tpu.memory_space<vmem>>, vector<8x128xf32>
    tpu.vector_store %arg10[%c0_28, %c0_29], %41 {strides = array<i32>} : memref<8x128xf32, #tpu.memory_space<vmem>>, vector<8x128xf32>,
    return
  }
  func.func @transform_0(%arg0: i32) -> (i32, i32) {
    %c0_i32 = arith.constant 0 : i32
    %c0_i32_0 = arith.constant 0 : i32
    return %arg0, %c0_i32 : i32, i32
  }
  func.func @transform_1(%arg0: i32) -> (i32, i32) {
    %c0_i32 = arith.constant 0 : i32
    %c0_i32_0 = arith.constant 0 : i32
    %c0_i32_1 = arith.constant 0 : i32
    return %c0_i32, %c0_i32_0 : i32, i32
  }
  func.func @transform_2(%arg0: i32) -> (i32, i32) {
    %c0_i32 = arith.constant 0 : i32
    %c0_i32_0 = arith.constant 0 : i32
    %c0_i32_1 = arith.constant 0 : i32
    return %c0_i32, %c0_i32_0 : i32, i32
  }
  func.func @transform_3(%arg0: i32) -> (i32, i32) {
    %c0_i32 = arith.constant 0 : i32
    %c0_i32_0 = arith.constant 0 : i32
    %c0_i32_1 = arith.constant 0 : i32
    return %c0_i32, %c0_i32_0 : i32, i32
  }
  func.func @transform_4(%arg0: i32) -> (i32, i32) {
    %c0_i32 = arith.constant 0 : i32
    %c0_i32_0 = arith.constant 0 : i32
    %c0_i32_1 = arith.constant 0 : i32
    return %c0_i32, %c0_i32_0 : i32, i32
  }
  func.func @transform_5(%arg0: i32) -> (i32, i32) {
    %c0_i32 = arith.constant 0 : i32
    %c0_i32_0 = arith.constant 0 : i32
    %c0_i32_1 = arith.constant 0 : i32
    return %c0_i32, %c0_i32_0 : i32, i32
  }
  func.func @transform_6(%arg0: i32) -> (i32, i32) {
    %c0_i32 = arith.constant 0 : i32
    %c0_i32_0 = arith.constant 0 : i32
    %c0_i32_1 = arith.constant 0 : i32
    return %c0_i32, %c0_i32_0 : i32, i32
  }
  func.func @transform_7(%arg0: i32) -> (i32, i32) {
    %c0_i32 = arith.constant 0 : i32
    %c0_i32_0 = arith.constant 0 : i32
    %c0_i32_1 = arith.constant 0 : i32
    return %c0_i32, %c0_i32_0 : i32, i32
  }
  func.func @transform_8(%arg0: i32) -> (i32, i32) {
    %c0_i32 = arith.constant 0 : i32
    %c0_i32_0 = arith.constant 0 : i32
    %c0_i32_1 = arith.constant 0 : i32
    return %c0_i32, %c0_i32_0 : i32, i32
  }
  func.func @transform_9(%arg0: i32) -> (i32, i32) {
    %c0_i32 = arith.constant 0 : i32
    %c0_i32_0 = arith.constant 0 : i32
    return %arg0, %c0_i32 : i32, i32
  }
}

</mosaic_0001>

<llo_original>
// kernel: discriminator_forward.1
$region0: #{discriminator_forward.1}
  #allocation0 [shape = 'u32[]', space=smem, size = 0x4, offset = 0x4, fixed_abs, tag = 'smem constant byte address 0x4 - core index']
  #allocation1 [shape = 'u32[144,128]{1,0:T(1,128)}', space=vmem, size = 0x12000, scoped, tag = 'internal scratch']
  %s0 = inlined_call_operand.vmem [shape: f32[8,128], index: 0, kind: input, shape index: {}]
  %s1 = inlined_call_operand.vmem [shape: f32[128,128], index: 1, kind: input, shape index: {}]
  %s2 = inlined_call_operand.vmem [shape: f32[1,128], index: 2, kind: input, shape index: {}]
  %s3 = inlined_call_operand.vmem [shape: f32[128,128], index: 3, kind: input, shape index: {}]
  %s4 = inlined_call_operand.vmem [shape: f32[1,128], index: 4, kind: input, shape index: {}]
  %s5 = inlined_call_operand.vmem [shape: f32[128,128], index: 5, kind: input, shape index: {}]
  %s6 = inlined_call_operand.vmem [shape: f32[1,128], index: 6, kind: input, shape index: {}]
  %s7 = inlined_call_operand.vmem [shape: f32[128,128], index: 7, kind: input, shape index: {}]
  %s8 = inlined_call_operand.vmem [shape: f32[1,128], index: 8, kind: input, shape index: {}]
  %s9 = inlined_call_operand.vmem [shape: f32[8,128], index: 9, kind: output, shape index: {}]
  %s10 = sld [smem:[#allocation0]]
  $region46: #{discriminator_forward.1} parent=0
    _
  %s12 = ssub.s32 1, %s10
  %s13 = scalar_select 0, %s12, %s10
  // Predicated region
  $region2: #{discriminator_forward.1} parent=0 // pred_check
    _
  $region3: #{discriminator_forward.1} parent=0 // pred_check_branch
    %15 = sbr.rel (0) target = $region5
  $region4: #{discriminator_forward.1} parent=0 // pred_region
    _
  $region5: #{discriminator_forward.1} parent=0 // pred_fallthru
    _
  // Predicated region
  $region6: #{discriminator_forward.1} parent=0 // pred_check
    _
  $region7: #{discriminator_forward.1} parent=0 // pred_check_branch
    %17 = sbr.rel (0) target = $region9
  $region8: #{discriminator_forward.1} parent=0 // pred_region
    _
  $region9: #{discriminator_forward.1} parent=0 // pred_fallthru
    _
  // Predicated region
  $region10: #{discriminator_forward.1} parent=0 // pred_check
    _
  $region11: #{discriminator_forward.1} parent=0 // pred_check_branch
    %19 = sbr.rel (0) target = $region13
  $region12: #{discriminator_forward.1} parent=0 // pred_region
    _
  $region13: #{discriminator_forward.1} parent=0 // pred_fallthru
    _
  // Predicated region
  $region14: #{discriminator_forward.1} parent=0 // pred_check
    _
  $region15: #{discriminator_forward.1} parent=0 // pred_check_branch
    %21 = sbr.rel (0) target = $region17
  $region16: #{discriminator_forward.1} parent=0 // pred_region
    _
  $region17: #{discriminator_forward.1} parent=0 // pred_fallthru
    _
  // Predicated region
  $region18: #{discriminator_forward.1} parent=0 // pred_check
    _
  $region19: #{discriminator_forward.1} parent=0 // pred_check_branch
    %23 = sbr.rel (0) target = $region21
  $region20: #{discriminator_forward.1} parent=0 // pred_region
    _
  $region21: #{discriminator_forward.1} parent=0 // pred_fallthru
    _
  // Predicated region
  $region22: #{discriminator_forward.1} parent=0 // pred_check
    _
  $region23: #{discriminator_forward.1} parent=0 // pred_check_branch
    %25 = sbr.rel (0) target = $region25
  $region24: #{discriminator_forward.1} parent=0 // pred_region
    _
  $region25: #{discriminator_forward.1} parent=0 // pred_fallthru
    _
  // Predicated region
  $region26: #{discriminator_forward.1} parent=0 // pred_check
    _
  $region27: #{discriminator_forward.1} parent=0 // pred_check_branch
    %27 = sbr.rel (0) target = $region29
  $region28: #{discriminator_forward.1} parent=0 // pred_region
    _
  $region29: #{discriminator_forward.1} parent=0 // pred_fallthru
    _
  // Predicated region
  $region30: #{discriminator_forward.1} parent=0 // pred_check
    _
  $region31: #{discriminator_forward.1} parent=0 // pred_check_branch
    %29 = sbr.rel (0) target = $region33
  $region32: #{discriminator_forward.1} parent=0 // pred_region
    _
  $region33: #{discriminator_forward.1} parent=0 // pred_fallthru
    _
  // Predicated region
  $region34: #{discriminator_forward.1} parent=0 // pred_check
    _
  $region35: #{discriminator_forward.1} parent=0 // pred_check_branch
    %31 = sbr.rel (0) target = $region37
  $region36: #{discriminator_forward.1} parent=0 // pred_region
    _
  $region37: #{discriminator_forward.1} parent=0 // pred_fallthru
    _
  %v32 = vld [vmem:[%s0] sm:$0xff]
  %v33 = vld [vmem:[%s1] sm:$0xff]
  %v34 = vld [vmem:[%s1 + $0x8] sm:$0xff]
  %v35 = vld [vmem:[%s1 + $0x10] sm:$0xff]
  %v36 = vld [vmem:[%s1 + $0x18] sm:$0xff]
  %v37 = vld [vmem:[%s1 + $0x20] sm:$0xff]
  %v38 = vld [vmem:[%s1 + $0x28] sm:$0xff]
  %v39 = vld [vmem:[%s1 + $0x30] sm:$0xff]
  %v40 = vld [vmem:[%s1 + $0x38] sm:$0xff]
  %v41 = vld [vmem:[%s1 + $0x40] sm:$0xff]
  %v42 = vld [vmem:[%s1 + $0x48] sm:$0xff]
  %v43 = vld [vmem:[%s1 + $0x50] sm:$0xff]
  %v44 = vld [vmem:[%s1 + $0x58] sm:$0xff]
  %v45 = vld [vmem:[%s1 + $0x60] sm:$0xff]
  %v46 = vld [vmem:[%s1 + $0x68] sm:$0xff]
  %v47 = vld [vmem:[%s1 + $0x70] sm:$0xff]
  %v48 = vld [vmem:[%s1 + $0x78] sm:$0xff]
  %v49 = vld [vmem:[%s2] sm:$0x1]
  %v51 = vlaneseq
  %v52 = vshrl.u32 %v51, 7
  %v53 = vsub.s32 0, %v52
  %v54 = vrot.slane %v49, %v53
  %56 = vmatprep.subr.mxu0 0.0
  %57 = vmatpush1.msra.mxu0 %v48
  %58 = vmatprep.subr.mxu0 0.0
  %59 = vmatpush1.msra.mxu0 %v47
  %60 = vmatprep.subr.mxu0 0.0
  %61 = vmatpush1.msra.mxu0 %v46
  %62 = vmatprep.subr.mxu0 0.0
  %63 = vmatpush1.msra.mxu0 %v45
  %64 = vmatprep.subr.mxu0 0.0
  %65 = vmatpush1.msra.mxu0 %v44
  %66 = vmatprep.subr.mxu0 0.0
  %67 = vmatpush1.msra.mxu0 %v43
  %68 = vmatprep.subr.mxu0 0.0
  %69 = vmatpush1.msra.mxu0 %v42
  %70 = vmatprep.subr.mxu0 0.0
  %71 = vmatpush1.msra.mxu0 %v41
  %72 = vmatprep.subr.mxu0 0.0
  %73 = vmatpush1.msra.mxu0 %v40
  %74 = vmatprep.subr.mxu0 0.0
  %75 = vmatpush1.msra.mxu0 %v39
  %76 = vmatprep.subr.mxu0 0.0
  %77 = vmatpush1.msra.mxu0 %v38
  %78 = vmatprep.subr.mxu0 0.0
  %79 = vmatpush1.msra.mxu0 %v37
  %80 = vmatprep.subr.mxu0 0.0
  %81 = vmatpush1.msra.mxu0 %v36
  %82 = vmatprep.subr.mxu0 0.0
  %83 = vmatpush1.msra.mxu0 %v35
  %84 = vmatprep.subr.mxu0 0.0
  %85 = vmatpush1.msra.mxu0 %v34
  %86 = vmatprep.subr.mxu0 0.0
  %87 = vmatpush1.msra.mxu0 %v33
  %88 = vmatprep.subr.mxu0 0.0
  %89 = vmatpush2.msra.mxu0 0.0
  %90 = vmatprep.subr.mxu0 0.0
  %91 = vmatpush2.msra.mxu0 0.0
  %92 = vmatprep.subr.mxu0 0.0
  %93 = vmatpush2.msra.mxu0 0.0
  %94 = vmatprep.subr.mxu0 0.0
  %95 = vmatpush2.msra.mxu0 0.0
  %96 = vmatprep.subr.mxu0 0.0
  %97 = vmatpush2.msra.mxu0 0.0
  %98 = vmatprep.subr.mxu0 0.0
  %99 = vmatpush2.msra.mxu0 0.0
  %100 = vmatprep.subr.mxu0 0.0
  %101 = vmatpush2.msra.mxu0 0.0
  %102 = vmatprep.subr.mxu0 0.0
  %103 = vmatpush2.msra.mxu0 0.0
  %104 = vmatprep.subr.mxu0 0.0
  %105 = vmatpush2.msra.mxu0 0.0
  %106 = vmatprep.subr.mxu0 0.0
  %107 = vmatpush2.msra.mxu0 0.0
  %108 = vmatprep.subr.mxu0 0.0
  %109 = vmatpush2.msra.mxu0 0.0
  %110 = vmatprep.subr.mxu0 0.0
  %111 = vmatpush2.msra.mxu0 0.0
  %112 = vmatprep.subr.mxu0 0.0
  %113 = vmatpush2.msra.mxu0 0.0
  %114 = vmatprep.subr.mxu0 0.0
  %115 = vmatpush2.msra.mxu0 0.0
  %116 = vmatprep.subr.mxu0 0.0
  %117 = vmatpush2.msra.mxu0 0.0
  %118 = vmatprep.subr.mxu0 0.0
  %119 = vmatpush2.msra.mxu0 0.0
  %120 = vmatprep.mubr.f32.mxu0 0.0
  %121 = vmatmul.mubr.f32.gmra.mxu0 %v32
  %v122 = vpop.f32.mrf.mxu0
  %v123 = vadd.f32 %v54, %v122
  %v124 = vpop.f32.mrf.mxu0
  %125 = vdwg.mxu0
  %vm126 = vcmp.ge.f32.partialorder %v123, 0.0
  %v127 = vmul.f32 %v123, 0.02
  %v128 = vsel %vm126, %v123, %v127
  %v129 = vld [vmem:[%s3] sm:$0xff]
  %v130 = vld [vmem:[%s3 + $0x8] sm:$0xff]
  %v131 = vld [vmem:[%s3 + $0x10] sm:$0xff]
  %v132 = vld [vmem:[%s3 + $0x18] sm:$0xff]
  %v133 = vld [vmem:[%s3 + $0x20] sm:$0xff]
  %v134 = vld [vmem:[%s3 + $0x28] sm:$0xff]
  %v135 = vld [vmem:[%s3 + $0x30] sm:$0xff]
  %v136 = vld [vmem:[%s3 + $0x38] sm:$0xff]
  %v137 = vld [vmem:[%s3 + $0x40] sm:$0xff]
  %v138 = vld [vmem:[%s3 + $0x48] sm:$0xff]
  %v139 = vld [vmem:[%s3 + $0x50] sm:$0xff]
  %v140 = vld [vmem:[%s3 + $0x58] sm:$0xff]
  %v141 = vld [vmem:[%s3 + $0x60] sm:$0xff]
  %v142 = vld [vmem:[%s3 + $0x68] sm:$0xff]
  %v143 = vld [vmem:[%s3 + $0x70] sm:$0xff]
  %v144 = vld [vmem:[%s3 + $0x78] sm:$0xff]
  %v145 = vld [vmem:[%s4] sm:$0x1]
  %v147 = vlaneseq
  %v148 = vshrl.u32 %v147, 7
  %v149 = vsub.s32 0, %v148
  %v150 = vrot.slane %v145, %v149
  %152 = vmatprep.subr.mxu0 0.0
  %153 = vmatpush1.msra.mxu0 %v144
  %154 = vmatprep.subr.mxu0 0.0
  %155 = vmatpush1.msra.mxu0 %v143
  %156 = vmatprep.subr.mxu0 0.0
  %157 = vmatpush1.msra.mxu0 %v142
  %158 = vmatprep.subr.mxu0 0.0
  %159 = vmatpush1.msra.mxu0 %v141
  %160 = vmatprep.subr.mxu0 0.0
  %161 = vmatpush1.msra.mxu0 %v140
  %162 = vmatprep.subr.mxu0 0.0
  %163 = vmatpush1.msra.mxu0 %v139
  %164 = vmatprep.subr.mxu0 0.0
  %165 = vmatpush1.msra.mxu0 %v138
  %166 = vmatprep.subr.mxu0 0.0
  %167 = vmatpush1.msra.mxu0 %v137
  %168 = vmatprep.subr.mxu0 0.0
  %169 = vmatpush1.msra.mxu0 %v136
  %170 = vmatprep.subr.mxu0 0.0
  %171 = vmatpush1.msra.mxu0 %v135
  %172 = vmatprep.subr.mxu0 0.0
  %173 = vmatpush1.msra.mxu0 %v134
  %174 = vmatprep.subr.mxu0 0.0
  %175 = vmatpush1.msra.mxu0 %v133
  %176 = vmatprep.subr.mxu0 0.0
  %177 = vmatpush1.msra.mxu0 %v132
  %178 = vmatprep.subr.mxu0 0.0
  %179 = vmatpush1.msra.mxu0 %v131
  %180 = vmatprep.subr.mxu0 0.0
  %181 = vmatpush1.msra.mxu0 %v130
  %182 = vmatprep.subr.mxu0 0.0
  %183 = vmatpush1.msra.mxu0 %v129
  %184 = vmatprep.subr.mxu0 0.0
  %185 = vmatpush2.msra.mxu0 0.0
  %186 = vmatprep.subr.mxu0 0.0
  %187 = vmatpush2.msra.mxu0 0.0
  %188 = vmatprep.subr.mxu0 0.0
  %189 = vmatpush2.msra.mxu0 0.0
  %190 = vmatprep.subr.mxu0 0.0
  %191 = vmatpush2.msra.mxu0 0.0
  %192 = vmatprep.subr.mxu0 0.0
  %193 = vmatpush2.msra.mxu0 0.0
  %194 = vmatprep.subr.mxu0 0.0
  %195 = vmatpush2.msra.mxu0 0.0
  %196 = vmatprep.subr.mxu0 0.0
  %197 = vmatpush2.msra.mxu0 0.0
  %198 = vmatprep.subr.mxu0 0.0
  %199 = vmatpush2.msra.mxu0 0.0
  %200 = vmatprep.subr.mxu0 0.0
  %201 = vmatpush2.msra.mxu0 0.0
  %202 = vmatprep.subr.mxu0 0.0
  %203 = vmatpush2.msra.mxu0 0.0
  %204 = vmatprep.subr.mxu0 0.0
  %205 = vmatpush2.msra.mxu0 0.0
  %206 = vmatprep.subr.mxu0 0.0
  %207 = vmatpush2.msra.mxu0 0.0
  %208 = vmatprep.subr.mxu0 0.0
  %209 = vmatpush2.msra.mxu0 0.0
  %210 = vmatprep.subr.mxu0 0.0
  %211 = vmatpush2.msra.mxu0 0.0
  %212 = vmatprep.subr.mxu0 0.0
  %213 = vmatpush2.msra.mxu0 0.0
  %214 = vmatprep.subr.mxu0 0.0
  %215 = vmatpush2.msra.mxu0 0.0
  %216 = vmatprep.mubr.f32.mxu0 0.0
  %217 = vmatmul.mubr.f32.gmra.mxu0 %v128
  %v218 = vpop.f32.mrf.mxu0
  %v219 = vadd.f32 %v150, %v218
  %v220 = vpop.f32.mrf.mxu0
  %221 = vdwg.mxu0
  %vm222 = vcmp.ge.f32.partialorder %v219, 0.0
  %v223 = vmul.f32 %v219, 0.02
  %v224 = vsel %vm222, %v219, %v223
  %v225 = vld [vmem:[%s5] sm:$0xff]
  %v226 = vld [vmem:[%s5 + $0x8] sm:$0xff]
  %v227 = vld [vmem:[%s5 + $0x10] sm:$0xff]
  %v228 = vld [vmem:[%s5 + $0x18] sm:$0xff]
  %v229 = vld [vmem:[%s5 + $0x20] sm:$0xff]
  %v230 = vld [vmem:[%s5 + $0x28] sm:$0xff]
  %v231 = vld [vmem:[%s5 + $0x30] sm:$0xff]
  %v232 = vld [vmem:[%s5 + $0x38] sm:$0xff]
  %v233 = vld [vmem:[%s5 + $0x40] sm:$0xff]
  %v234 = vld [vmem:[%s5 + $0x48] sm:$0xff]
  %v235 = vld [vmem:[%s5 + $0x50] sm:$0xff]
  %v236 = vld [vmem:[%s5 + $0x58] sm:$0xff]
  %v237 = vld [vmem:[%s5 + $0x60] sm:$0xff]
  %v238 = vld [vmem:[%s5 + $0x68] sm:$0xff]
  %v239 = vld [vmem:[%s5 + $0x70] sm:$0xff]
  %v240 = vld [vmem:[%s5 + $0x78] sm:$0xff]
  %v241 = vld [vmem:[%s6] sm:$0x1]
  %v243 = vlaneseq
  %v244 = vshrl.u32 %v243, 7
  %v245 = vsub.s32 0, %v244
  %v246 = vrot.slane %v241, %v245
  %248 = vmatprep.subr.mxu0 0.0
  %249 = vmatpush1.msra.mxu0 %v240
  %250 = vmatprep.subr.mxu0 0.0
  %251 = vmatpush1.msra.mxu0 %v239
  %252 = vmatprep.subr.mxu0 0.0
  %253 = vmatpush1.msra.mxu0 %v238
  %254 = vmatprep.subr.mxu0 0.0
  %255 = vmatpush1.msra.mxu0 %v237
  %256 = vmatprep.subr.mxu0 0.0
  %257 = vmatpush1.msra.mxu0 %v236
  %258 = vmatprep.subr.mxu0 0.0
  %259 = vmatpush1.msra.mxu0 %v235
  %260 = vmatprep.subr.mxu0 0.0
  %261 = vmatpush1.msra.mxu0 %v234
  %262 = vmatprep.subr.mxu0 0.0
  %263 = vmatpush1.msra.mxu0 %v233
  %264 = vmatprep.subr.mxu0 0.0
  %265 = vmatpush1.msra.mxu0 %v232
  %266 = vmatprep.subr.mxu0 0.0
  %267 = vmatpush1.msra.mxu0 %v231
  %268 = vmatprep.subr.mxu0 0.0
  %269 = vmatpush1.msra.mxu0 %v230
  %270 = vmatprep.subr.mxu0 0.0
  %271 = vmatpush1.msra.mxu0 %v229
  %272 = vmatprep.subr.mxu0 0.0
  %273 = vmatpush1.msra.mxu0 %v228
  %274 = vmatprep.subr.mxu0 0.0
  %275 = vmatpush1.msra.mxu0 %v227
  %276 = vmatprep.subr.mxu0 0.0
  %277 = vmatpush1.msra.mxu0 %v226
  %278 = vmatprep.subr.mxu0 0.0
  %279 = vmatpush1.msra.mxu0 %v225
  %280 = vmatprep.subr.mxu0 0.0
  %281 = vmatpush2.msra.mxu0 0.0
  %282 = vmatprep.subr.mxu0 0.0
  %283 = vmatpush2.msra.mxu0 0.0
  %284 = vmatprep.subr.mxu0 0.0
  %285 = vmatpush2.msra.mxu0 0.0
  %286 = vmatprep.subr.mxu0 0.0
  %287 = vmatpush2.msra.mxu0 0.0
  %288 = vmatprep.subr.mxu0 0.0
  %289 = vmatpush2.msra.mxu0 0.0
  %290 = vmatprep.subr.mxu0 0.0
  %291 = vmatpush2.msra.mxu0 0.0
  %292 = vmatprep.subr.mxu0 0.0
  %293 = vmatpush2.msra.mxu0 0.0
  %294 = vmatprep.subr.mxu0 0.0
  %295 = vmatpush2.msra.mxu0 0.0
  %296 = vmatprep.subr.mxu0 0.0
  %297 = vmatpush2.msra.mxu0 0.0
  %298 = vmatprep.subr.mxu0 0.0
  %299 = vmatpush2.msra.mxu0 0.0
  %300 = vmatprep.subr.mxu0 0.0
  %301 = vmatpush2.msra.mxu0 0.0
  %302 = vmatprep.subr.mxu0 0.0
  %303 = vmatpush2.msra.mxu0 0.0
  %304 = vmatprep.subr.mxu0 0.0
  %305 = vmatpush2.msra.mxu0 0.0
  %306 = vmatprep.subr.mxu0 0.0
  %307 = vmatpush2.msra.mxu0 0.0
  %308 = vmatprep.subr.mxu0 0.0
  %309 = vmatpush2.msra.mxu0 0.0
  %310 = vmatprep.subr.mxu0 0.0
  %311 = vmatpush2.msra.mxu0 0.0
  %312 = vmatprep.mubr.f32.mxu0 0.0
  %313 = vmatmul.mubr.f32.gmra.mxu0 %v224
  %v314 = vpop.f32.mrf.mxu0
  %v315 = vadd.f32 %v246, %v314
  %v316 = vpop.f32.mrf.mxu0
  %317 = vdwg.mxu0
  %vm318 = vcmp.ge.f32.partialorder %v315, 0.0
  %v319 = vmul.f32 %v315, 0.02
  %v320 = vsel %vm318, %v315, %v319
  %v321 = vld [vmem:[%s7] sm:$0xff]
  %v322 = vld [vmem:[%s7 + $0x8] sm:$0xff]
  %v323 = vld [vmem:[%s7 + $0x10] sm:$0xff]
  %v324 = vld [vmem:[%s7 + $0x18] sm:$0xff]
  %v325 = vld [vmem:[%s7 + $0x20] sm:$0xff]
  %v326 = vld [vmem:[%s7 + $0x28] sm:$0xff]
  %v327 = vld [vmem:[%s7 + $0x30] sm:$0xff]
  %v328 = vld [vmem:[%s7 + $0x38] sm:$0xff]
  %v329 = vld [vmem:[%s7 + $0x40] sm:$0xff]
  %v330 = vld [vmem:[%s7 + $0x48] sm:$0xff]
  %v331 = vld [vmem:[%s7 + $0x50] sm:$0xff]
  %v332 = vld [vmem:[%s7 + $0x58] sm:$0xff]
  %v333 = vld [vmem:[%s7 + $0x60] sm:$0xff]
  %v334 = vld [vmem:[%s7 + $0x68] sm:$0xff]
  %v335 = vld [vmem:[%s7 + $0x70] sm:$0xff]
  %v336 = vld [vmem:[%s7 + $0x78] sm:$0xff]
  %v337 = vld [vmem:[%s8] sm:$0x1]
  %v339 = vlaneseq
  %v340 = vshrl.u32 %v339, 7
  %v341 = vsub.s32 0, %v340
  %v342 = vrot.slane %v337, %v341
  %344 = vmatprep.subr.mxu0 0.0
  %345 = vmatpush1.msra.mxu0 %v336
  %346 = vmatprep.subr.mxu0 0.0
  %347 = vmatpush1.msra.mxu0 %v335
  %348 = vmatprep.subr.mxu0 0.0
  %349 = vmatpush1.msra.mxu0 %v334
  %350 = vmatprep.subr.mxu0 0.0
  %351 = vmatpush1.msra.mxu0 %v333
  %352 = vmatprep.subr.mxu0 0.0
  %353 = vmatpush1.msra.mxu0 %v332
  %354 = vmatprep.subr.mxu0 0.0
  %355 = vmatpush1.msra.mxu0 %v331
  %356 = vmatprep.subr.mxu0 0.0
  %357 = vmatpush1.msra.mxu0 %v330
  %358 = vmatprep.subr.mxu0 0.0
  %359 = vmatpush1.msra.mxu0 %v329
  %360 = vmatprep.subr.mxu0 0.0
  %361 = vmatpush1.msra.mxu0 %v328
  %362 = vmatprep.subr.mxu0 0.0
  %363 = vmatpush1.msra.mxu0 %v327
  %364 = vmatprep.subr.mxu0 0.0
  %365 = vmatpush1.msra.mxu0 %v326
  %366 = vmatprep.subr.mxu0 0.0
  %367 = vmatpush1.msra.mxu0 %v325
  %368 = vmatprep.subr.mxu0 0.0
  %369 = vmatpush1.msra.mxu0 %v324
  %370 = vmatprep.subr.mxu0 0.0
  %371 = vmatpush1.msra.mxu0 %v323
  %372 = vmatprep.subr.mxu0 0.0
  %373 = vmatpush1.msra.mxu0 %v322
  %374 = vmatprep.subr.mxu0 0.0
  %375 = vmatpush1.msra.mxu0 %v321
  %376 = vmatprep.subr.mxu0 0.0
  %377 = vmatpush2.msra.mxu0 0.0
  %378 = vmatprep.subr.mxu0 0.0
  %379 = vmatpush2.msra.mxu0 0.0
  %380 = vmatprep.subr.mxu0 0.0
  %381 = vmatpush2.msra.mxu0 0.0
  %382 = vmatprep.subr.mxu0 0.0
  %383 = vmatpush2.msra.mxu0 0.0
  %384 = vmatprep.subr.mxu0 0.0
  %385 = vmatpush2.msra.mxu0 0.0
  %386 = vmatprep.subr.mxu0 0.0
  %387 = vmatpush2.msra.mxu0 0.0
  %388 = vmatprep.subr.mxu0 0.0
  %389 = vmatpush2.msra.mxu0 0.0
  %390 = vmatprep.subr.mxu0 0.0
  %391 = vmatpush2.msra.mxu0 0.0
  %392 = vmatprep.subr.mxu0 0.0
  %393 = vmatpush2.msra.mxu0 0.0
  %394 = vmatprep.subr.mxu0 0.0
  %395 = vmatpush2.msra.mxu0 0.0
  %396 = vmatprep.subr.mxu0 0.0
  %397 = vmatpush2.msra.mxu0 0.0
  %398 = vmatprep.subr.mxu0 0.0
  %399 = vmatpush2.msra.mxu0 0.0
  %400 = vmatprep.subr.mxu0 0.0
  %401 = vmatpush2.msra.mxu0 0.0
  %402 = vmatprep.subr.mxu0 0.0
  %403 = vmatpush2.msra.mxu0 0.0
  %404 = vmatprep.subr.mxu0 0.0
  %405 = vmatpush2.msra.mxu0 0.0
  %406 = vmatprep.subr.mxu0 0.0
  %407 = vmatpush2.msra.mxu0 0.0
  %408 = vmatprep.mubr.f32.mxu0 0.0
  %409 = vmatmul.mubr.f32.gmra.mxu0 %v320
  %v410 = vpop.f32.mrf.mxu0
  %v411 = vadd.f32 %v342, %v410
  %v412 = vpop.f32.mrf.mxu0
  %413 = vdwg.mxu0
  %v414 = vsub.f32 0.0, %v411
  %v415 = vmul.f32 %v414, 1.442695
  %v416 = vpow.pop %v415
  %v417 = vadd.f32 %v416, 1.0
  %v418 = vrcp.pop %v417
  %419 = vst [vmem:[%s9] sm:$0xff] %v418
  // Predicated region
  $region38: #{discriminator_forward.1} parent=0 // pred_check
    _
  $region39: #{discriminator_forward.1} parent=0 // pred_check_branch
    %421 = sbr.rel (0) target = $region41
  $region40: #{discriminator_forward.1} parent=0 // pred_region
    _
  $region41: #{discriminator_forward.1} parent=0 // pred_fallthru
    _
  // Predicated region
  $region42: #{discriminator_forward.1} parent=0 // pred_check
    _
  $region43: #{discriminator_forward.1} parent=0 // pred_check_branch
    %423 = sbr.rel (0) target = $region45
  $region44: #{discriminator_forward.1} parent=0 // pred_region
    _
  $region45: #{discriminator_forward.1} parent=0 // pred_fallthru
    _

</llo_original>
